<compile_context>
chip_gen: v5e
topology: v5e:2x2
jax: 0.10.0
libtpu: 0.0.40
codegen_flags: <defaults>
</compile_context>

<pallas_src>
from functools import partial

import jax
import jax.numpy as jnp
from jax.experimental import pallas as pl
from jax.experimental.pallas import tpu as pltpu

KH, KW = 6, 6            # conv kernel
STRIDE = 2
PAD = 3
C_OUT = 32
H_IN = W_IN = 150
H_CONV = W_CONV = 76     # floor((150 + 2*3 - 6)/2) + 1
H_POOL = W_POOL = 38     # 76 // 2
NP = H_POOL * W_POOL     # 1444 pooled spatial positions
CHUNK = 128              # pooled spatial positions per inner step (one vreg of lanes)
N_CHUNKS = 12            # ceil(1444 / 128)
NP_PAD = N_CHUNKS * CHUNK        # 1536, lane-aligned spatial axis
N_FEAT = C_OUT * NP      # 46208
N_CLASSES = 2
KK = KH * KW             # 36 patch features
N_QUAD = 4               # 2x2 max-pool quadrants
RHS_W = N_QUAD * CHUNK   # 512 lanes per merged matmul RHS


def _basenet_kernel(p_ref, wc_ref, wd_ref, o_ref, *, batch_per_step):
    """Fused conv-as-matmul + ReLU + 2x2 maxpool + dense.

    p_ref  : (G, N_CHUNKS, 36, 512) bf16  im2col patches; the 512 lanes of each
             chunk are [q0|q1|q2|q3] x 128 pooled spatial positions
    wc_ref : (32, 36)               bf16  conv weight, (out_channel, ky*6+kx)
    wd_ref : (2, N_CHUNKS, 32, 128) bf16  dense weight, zero-padded spatially
    o_ref  : (G, 8, 128)            f32   logits of batch g live at [g, 0, 0:2]
    """
    wc = wc_ref[...]                                     # (32, 36) bf16, loaded once
    lane = jax.lax.broadcasted_iota(jnp.int32, (8, 128), 1)

    for b in range(batch_per_step):                      # static: 1 (multi-TC) or B (single-TC)

        def chunk_body(s, carry):
            acc0, acc1 = carry
            # One merged MXU call covering all four pool quadrants of the chunk.
            r = jnp.dot(wc, p_ref[b, s, :, :],
                        preferred_element_type=jnp.float32)       # (32, 512) f32
            # 2x2 max-pool = vreg maxes across the four 128-lane quadrant groups,
            # then a single hoisted ReLU (relu(max) == max(relu)).
            pooled = jnp.maximum(
                jnp.maximum(r[:, 0 * CHUNK:1 * CHUNK], r[:, 1 * CHUNK:2 * CHUNK]),
                jnp.maximum(r[:, 2 * CHUNK:3 * CHUNK], r[:, 3 * CHUNK:4 * CHUNK]))
            pooled = jnp.maximum(pooled, 0.0)                      # (32, 128) f32
            # Dense layer: f32 vector accumulators; no per-chunk reduction.
            acc0 = acc0 + pooled * wd_ref[0, s, :, :]
            acc1 = acc1 + pooled * wd_ref[1, s, :, :]
            return acc0, acc1

        zero = jnp.zeros((C_OUT, CHUNK), jnp.float32)
        acc0, acc1 = jax.lax.fori_loop(0, N_CHUNKS, chunk_body, (zero, zero))

        # Exactly one cross-lane/sublane reduction per logit, per batch element.
        o_ref[b] = jnp.where(lane == 0, jnp.sum(acc0),
                             jnp.where(lane == 1, jnp.sum(acc1), 0.0))


def _single_tensorcore_chip() -> bool:
    """True for 1-TensorCore-per-device chips (v5e/v6e): fold batch into one step."""
    try:
        kind = jax.devices()[0].device_kind.lower()
    except Exception:
        return False
    return any(tag in kind for tag in ("lite", "v5e", "v6e"))


@jax.jit
def base_paper_net_forward(x, w_conv, w_dense, b_dense):
    """x: (B, 1, 150, 150) NCHW f32. Returns logits (B, 2) f32."""
    B = x.shape[0]
    # Batch elements per grid step: fold the whole batch into one invocation on
    # single-TC chips (kills per-grid-step overhead); keep one per step on
    # multi-TC chips so the "parallel" grid axis maps batch -> TensorCores.
    g = B if _single_tensorcore_chip() else 1

    # --- glue: bf16 zero-pad + per-quadrant stride-4 im2col (all in bf16) ---
    xp = jnp.pad(x[:, 0].astype(jnp.bfloat16),
                 ((0, 0), (PAD, PAD), (PAD, PAD)))        # (B, 156, 156) bf16

    # pool output (pi, pj) of quadrant (dy, dx) reads
    #   xp[4*pi + 2*dy + ky, 4*pj + 2*dx + kx]
    # so each (quadrant, ky, kx) is a stride-4 slice of the padded image.
    quads = []
    for dy in range(2):
        for dx in range(2):
            feats = []
            for ky in range(KH):
                for kx in range(KW):
                    sy = 2 * dy + ky
                    sx = 2 * dx + kx
                    feats.append(
                        xp[:, sy:sy + 4 * H_POOL - 3:4,
                              sx:sx + 4 * W_POOL - 3:4].reshape(B, NP))
            quads.append(jnp.stack(feats, axis=1))        # (B, 36, NP) bf16
    patches = jnp.stack(quads, axis=1)                    # (B, 4, 36, NP)
    patches = jnp.pad(patches, ((0, 0), (0, 0), (0, 0), (0, NP_PAD - NP)))
    # Relayout so each chunk is one lane-contiguous (36, 4*128) matmul RHS:
    # (B, 4, 36, N_CHUNKS, 128) -> (B, N_CHUNKS, 36, 4, 128) -> (B, N_CHUNKS, 36, 512)
    patches = patches.reshape(B, N_QUAD, KK, N_CHUNKS, CHUNK)
    patches = patches.transpose(0, 3, 2, 1, 4).reshape(B, N_CHUNKS, KK, RHS_W)

    # conv weight (32, 1, 6, 6) -> (32, 36): wc[o, ky*6+kx]
    wc = w_conv.reshape(C_OUT, KK).astype(jnp.bfloat16)
    # dense weight (2, 46208) with PyTorch flatten order (c, ph, pw)
    #   -> (2, 32, NP) -> zero-pad spatial to 1536 -> (2, N_CHUNKS, 32, 128)
    wd = w_dense.reshape(N_CLASSES, C_OUT, NP)
    wd = jnp.pad(wd, ((0, 0), (0, 0), (0, NP_PAD - NP))).astype(jnp.bfloat16)
    wd = wd.reshape(N_CLASSES, C_OUT, N_CHUNKS, CHUNK).transpose(0, 2, 1, 3)

    out = pl.pallas_call(
        partial(_basenet_kernel, batch_per_step=g),
        out_shape=jax.ShapeDtypeStruct((B, 8, 128), jnp.float32),
        grid=(B // g,),
        in_specs=[
            pl.BlockSpec((g, N_CHUNKS, KK, RHS_W), lambda i: (i, 0, 0, 0)),
            pl.BlockSpec((C_OUT, KK), lambda i: (0, 0)),
            pl.BlockSpec((N_CLASSES, N_CHUNKS, C_OUT, CHUNK),
                         lambda i: (0, 0, 0, 0)),
        ],
        out_specs=pl.BlockSpec((g, 8, 128), lambda i: (i, 0, 0)),
        compiler_params=pltpu.CompilerParams(
            dimension_semantics=("parallel",)),
    )(patches, wc, wd)

    # bias added here (cheaper than a DMA'd bias tile + lane scatter in-kernel)
    return out[:, 0, :N_CLASSES] + b_dense[None, :]


def reference(x, w_conv, w_dense, b_dense):
    """Pure-JAX f32 reference matching the PyTorch forward."""
    conv = jax.lax.conv_general_dilated(
        x, w_conv, window_strides=(STRIDE, STRIDE),
        padding=((PAD, PAD), (PAD, PAD)),
        dimension_numbers=("NCHW", "OIHW", "NCHW"),
        precision=jax.lax.Precision.HIGHEST)
    act = jnp.maximum(conv, 0.0)
    pooled = jax.lax.reduce_window(
        act, -jnp.inf, jax.lax.max,
        (1, 1, 2, 2), (1, 1, 2, 2), "VALID")
    flat = pooled.reshape(x.shape[0], -1)
    return jnp.dot(flat, w_dense.T,
                   precision=jax.lax.Precision.HIGHEST) + b_dense


if __name__ == "__main__":
    key = jax.random.PRNGKey(0)
    kx, kw1, kw2, kb = jax.random.split(key, 4)

    B = 2
    x = jax.random.normal(kx, (B, 1, H_IN, W_IN), jnp.float32)

    # Deterministic PyTorch-like (kaiming-uniform) init, generated in-script.
    conv_bound = 1.0 / (1 * KH * KW) ** 0.5
    w_conv = jax.random.uniform(kw1, (C_OUT, 1, KH, KW), jnp.float32,
                                -conv_bound, conv_bound)
    dense_bound = 1.0 / N_FEAT ** 0.5
    w_dense = jax.random.uniform(kw2, (N_CLASSES, N_FEAT), jnp.float32,
                                 -dense_bound, dense_bound)
    b_dense = jax.random.uniform(kb, (N_CLASSES,), jnp.float32,
                                 -dense_bound, dense_bound)

    y = jax.block_until_ready(base_paper_net_forward(x, w_conv, w_dense, b_dense))

    y_ref = reference(x, w_conv, w_dense, b_dense)
    assert y.shape == (B, N_CLASSES), y.shape
    assert jnp.allclose(y, y_ref, atol=1e-2, rtol=1e-2), (y, y_ref)

    print("KERNEL_OK")
</pallas_src>

<mosaic_0001>
module attributes {stable_mosaic.version = 11 : i64} {
  func.func @_basenet_kernel(%arg0: i32, %arg1: memref<1x12x36x512xbf16, #tpu.memory_space<vmem>>, %arg2: memref<32x36xbf16, #tpu.memory_space<vmem>>, %arg3: memref<2x12x32x128xbf16, #tpu.memory_space<vmem>>, %arg4: memref<1x8x128xf32, #tpu.memory_space<vmem>>) attributes {dimension_semantics = [#tpu.dimension_semantics<parallel>], iteration_bounds = array<i64: 2>, scalar_prefetch = 0 : i64, scratch_operands = 0 : i64, tpu.core_type = #tpu.core_type<tc>, window_params = [{transform_indices = @transform_0, window_bounds = array<i64: 1, 12, 36, 512>}, {pipeline_mode = #tpu.pipeline_mode<synchronous>, transform_indices = @transform_1, window_bounds = array<i64: 32, 36>}, {pipeline_mode = #tpu.pipeline_mode<synchronous>, transform_indices = @transform_2, window_bounds = array<i64: 2, 12, 32, 128>}, {transform_indices = @transform_3, window_bounds = array<i64: 1, 8, 128>}]} {
    %c0 = arith.constant 0 : index
    %c0_0 = arith.constant 0 : index
    %0 = vector.load %arg2[%c0, %c0_0] : memref<32x36xbf16, #tpu.memory_space<vmem>>, vector<32x36xbf16>
    %1 = tpu.iota {dimensions = array<i32: 1>} : vector<8x128xi32>
    %cst = arith.constant 0.000000e+00 : f32
    %2 = vector.broadcast %cst : f32 to vector<32x128xf32>
    %c0_i32 = arith.constant 0 : i32
    %c12_i32 = arith.constant 12 : i32
    %3 = arith.addi %c0_i32, %c12_i32 : i32
    %c1_i32 = arith.constant 1 : i32
    %4:2 = scf.for %arg5 = %c0_i32 to %3 step %c1_i32 iter_args(%arg6 = %2, %arg7 = %2) -> (vector<32x128xf32>, vector<32x128xf32>)  : i32 {
      %c0_10 = arith.constant 0 : index
      %25 = arith.index_cast %arg5 : i32 to index
      %c0_11 = arith.constant 0 : index
      %c0_12 = arith.constant 0 : index
      %26 = vector.load %arg1[%c0_10, %25, %c0_11, %c0_12] : memref<1x12x36x512xbf16, #tpu.memory_space<vmem>>, vector<1x1x36x512xbf16>
      %27 = vector.shape_cast %26 : vector<1x1x36x512xbf16> to vector<36x512xbf16>
      %cst_13 = arith.constant dense<0.000000e+00> : vector<32x512xf32>
      %28 = tpu.matmul %0, %27, %cst_13 {dimension_numbers = #tpu.dot_dimension_numbers<[1], [0], [0], [1], [0, 0, 1, 1], [], []>} : vector<32x36xbf16>, vector<36x512xbf16>, vector<32x512xf32> -> vector<32x512xf32>
      %29 = vector.extract_strided_slice %28 {offsets = [0, 0], sizes = [32, 128], strides = [1, 1]} : vector<32x512xf32> to vector<32x128xf32>
      %30 = vector.extract_strided_slice %28 {offsets = [0, 128], sizes = [32, 128], strides = [1, 1]} : vector<32x512xf32> to vector<32x128xf32>
      %31 = arith.maximumf %29, %30 : vector<32x128xf32>
      %32 = vector.extract_strided_slice %28 {offsets = [0, 256], sizes = [32, 128], strides = [1, 1]} : vector<32x512xf32> to vector<32x128xf32>
      %33 = vector.extract_strided_slice %28 {offsets = [0, 384], sizes = [32, 128], strides = [1, 1]} : vector<32x512xf32> to vector<32x128xf32>
      %34 = arith.maximumf %32, %33 : vector<32x128xf32>
      %35 = arith.maximumf %31, %34 : vector<32x128xf32>
      %cst_14 = arith.constant 0.000000e+00 : f32
      %36 = vector.broadcast %cst_14 : f32 to vector<32x128xf32>
      %37 = arith.maximumf %35, %36 : vector<32x128xf32>
      %c0_15 = arith.constant 0 : index
      %38 = arith.index_cast %arg5 : i32 to index
      %c0_16 = arith.constant 0 : index
      %c0_17 = arith.constant 0 : index
      %39 = vector.load %arg3[%c0_15, %38, %c0_16, %c0_17] : memref<2x12x32x128xbf16, #tpu.memory_space<vmem>>, vector<1x1x32x128xbf16>
      %40 = vector.shape_cast %39 : vector<1x1x32x128xbf16> to vector<32x128xbf16>
      %41 = arith.extf %40 : vector<32x128xbf16> to vector<32x128xf32>
      %42 = arith.mulf %37, %41 : vector<32x128xf32>
      %43 = arith.addf %arg6, %42 : vector<32x128xf32>
      %c1 = arith.constant 1 : index
      %44 = arith.index_cast %arg5 : i32 to index
      %c0_18 = arith.constant 0 : index
      %c0_19 = arith.constant 0 : index
      %45 = vector.load %arg3[%c1, %44, %c0_18, %c0_19] : memref<2x12x32x128xbf16, #tpu.memory_space<vmem>>, vector<1x1x32x128xbf16>
      %46 = vector.shape_cast %45 : vector<1x1x32x128xbf16> to vector<32x128xbf16>
      %47 = arith.extf %46 : vector<32x128xbf16> to vector<32x128xf32>
      %48 = arith.mulf %37, %47 : vector<32x128xf32>
      %49 = arith.addf %arg7, %48 : vector<32x128xf32>
      scf.yield %43, %49 : vector<32x128xf32>, vector<32x128xf32>
    }
    %c12_i32_1 = arith.constant 12 : i32
    %c0_i32_2 = arith.constant 0 : i32
    %5 = vector.broadcast %c0_i32_2 : i32 to vector<8x128xi32>
    %6 = arith.cmpi eq, %1, %5 : vector<8x128xi32>
    %7 = vector.shape_cast %4#0 : vector<32x128xf32> to vector<1x32x128xf32>
    %cst_3 = arith.constant dense<0.000000e+00> : vector<1xf32>
    %8 = vector.multi_reduction <add>, %7, %cst_3 [1, 2] : vector<1x32x128xf32> to vector<1xf32>
    %9 = vector.shape_cast %8 : vector<1xf32> to vector<1x1x1xf32>
    %10 = vector.extract %9[0, 0, 0] : f32 from vector<1x1x1xf32>
    %c1_i32_4 = arith.constant 1 : i32
    %11 = vector.broadcast %c1_i32_4 : i32 to vector<8x128xi32>
    %12 = arith.cmpi eq, %1, %11 : vector<8x128xi32>
    %13 = vector.shape_cast %4#1 : vector<32x128xf32> to vector<1x32x128xf32>
    %cst_5 = arith.constant dense<0.000000e+00> : vector<1xf32>
    %14 = vector.multi_reduction <add>, %13, %cst_5 [1, 2] : vector<1x32x128xf32> to vector<1xf32>
    %15 = vector.shape_cast %14 : vector<1xf32> to vector<1x1x1xf32>
    %16 = vector.extract %15[0, 0, 0] : f32 from vector<1x1x1xf32>
    %cst_6 = arith.constant 0.000000e+00 : f32
    %17 = vector.broadcast %16 : f32 to vector<8x128xf32>
    %18 = vector.broadcast %cst_6 : f32 to vector<8x128xf32>
    %19 = arith.select %12, %17, %18 : vector<8x128xi1>, vector<8x128xf32>
    %20 = vector.broadcast %10 : f32 to vector<8x128xf32>
    %21 = arith.select %6, %20, %19 : vector<8x128xi1>, vector<8x128xf32>
    %c0_7 = arith.constant 0 : index
    %c0_8 = arith.constant 0 : index
    %c0_9 = arith.constant 0 : index
    %22 = vector.load %arg4[%c0_7, %c0_8, %c0_9] : memref<1x8x128xf32, #tpu.memory_space<vmem>>, vector<1x8x128xf32>
    %23 = vector.shape_cast %22 : vector<1x8x128xf32> to vector<8x128xf32>
    %24 = vector.shape_cast %21 : vector<8x128xf32> to vector<1x8x128xf32>
    tpu.vector_store %arg4[%c0_7, %c0_8, %c0_9], %24 {strides = array<i32>} : memref<1x8x128xf32, #tpu.memory_space<vmem>>, vector<1x8x128xf32>,
    return
  }
  func.func @transform_0(%arg0: i32) -> (i32, i32, i32, i32) {
    %c0_i32 = arith.constant 0 : i32
    %c0_i32_0 = arith.constant 0 : i32
    %c0_i32_1 = arith.constant 0 : i32
    %c0_i32_2 = arith.constant 0 : i32
    return %arg0, %c0_i32, %c0_i32_0, %c0_i32_1 : i32, i32, i32, i32
  }
  func.func @transform_1(%arg0: i32) -> (i32, i32) {
    %c0_i32 = arith.constant 0 : i32
    %c0_i32_0 = arith.constant 0 : i32
    %c0_i32_1 = arith.constant 0 : i32
    return %c0_i32, %c0_i32_0 : i32, i32
  }
  func.func @transform_2(%arg0: i32) -> (i32, i32, i32, i32) {
    %c0_i32 = arith.constant 0 : i32
    %c0_i32_0 = arith.constant 0 : i32
    %c0_i32_1 = arith.constant 0 : i32
    %c0_i32_2 = arith.constant 0 : i32
    %c0_i32_3 = arith.constant 0 : i32
    return %c0_i32, %c0_i32_0, %c0_i32_1, %c0_i32_2 : i32, i32, i32, i32
  }
  func.func @transform_3(%arg0: i32) -> (i32, i32, i32) {
    %c0_i32 = arith.constant 0 : i32
    %c0_i32_0 = arith.constant 0 : i32
    %c0_i32_1 = arith.constant 0 : i32
    return %arg0, %c0_i32, %c0_i32_0 : i32, i32, i32
  }
}

</mosaic_0001>

<llo_original>
// kernel: base_paper_net_forward.1
$region0: #{base_paper_net_forward.1}
  #allocation0 [shape = 'u32[]', space=smem, size = 0x4, offset = 0x4, fixed_abs, tag = 'smem constant byte address 0x4 - core index']
  #allocation1 [shape = 'u32[72,128]{1,0:T(1,128)}', space=vmem, size = 0x9000, scoped, tag = 'internal scratch']
  %s0 = inlined_call_operand.vmem [shape: bf16[2,12,36,512], index: 0, kind: input, shape index: {}]
  %s1 = inlined_call_operand.vmem [shape: bf16[32,36], index: 1, kind: input, shape index: {}]
  %s2 = inlined_call_operand.vmem [shape: bf16[2,12,32,128], index: 2, kind: input, shape index: {}]
  %s3 = inlined_call_operand.vmem [shape: f32[2,8,128], index: 3, kind: output, shape index: {}]
  %s4 = sld [smem:[#allocation0]]
  $region52: #{base_paper_net_forward.1} parent=0
    _
  %s6 = ssub.s32 1, %s4
  %s7 = scalar_select 0, %s6, %s4
  loop: start=0, step=1, limit=4
  $region2: #{base_paper_net_forward.1} parent=0 // loop_pre_header
    _
  $region3: #{base_paper_net_forward.1} parent=0 // loop_header
    %s9 = sphi 0, %s13
    %p10 = scmp.ge.s32.totalorder %s9, 4
    %s19 = sphi 0, %s21
    %s22 = sphi 0, %s19
    %s23 = sphi 0, %s22
    %s39 = sphi 0, %s23
    %s43 = sphi 0, %s43
    %s45 = sphi 0, %s43
    %s46 = sphi 0, %s45
    %s60 = sphi 0, %s46
    %s64 = sphi 0, %s64
    %s66 = sphi 0, %s64
    %s67 = sphi 0, %s66
    %s81 = sphi 0, %s67
    %s87 = sphi 0, %s89
    %s90 = sphi 0, %s87
    %s91 = sphi 0, %s90
    %s107 = sphi 0, %s91
  $region4: #{base_paper_net_forward.1} parent=0 // loop_header_branch
    %12 = sbr.rel (%p10) target = $region8
  $region5: #{base_paper_net_forward.1} parent=0 // loop_body
    %s14 = ssub.s32 %s9, 1
    %s15 = ssub.s32 %s9, 2
    %s16 = sadd.s32 %s9, 1
    %s17 = ssub.s32 %s9, %s16
    %p18 = scmp.eq.s32.totalorder %s17, 0
    %s20 = sadd.s32 %s19, 1
    %s21 = scalar_select %p18, %s19, %s20
    %p24 = pneg %p18
    %p25 = scmp.eq.s32.totalorder %s9, 1
    %p26 = por %p24, %p25
    %p27 = scmp.ne.s32.totalorder %s19, %s22
    %p28 = scmp.eq.s32.totalorder %s9, 0
    %p29 = por %p27, %p28
    %p30 = scmp.ne.s32.totalorder %s19, %s22
    %p31 = scmp.eq.s32.totalorder %s14, 1
    %p32 = por %p30, %p31
    %p33 = scmp.ne.s32.totalorder %s22, %s23
    %p34 = scmp.eq.s32.totalorder %s14, 0
    %p35 = por %p33, %p34
    %p36 = scmp.ne.s32.totalorder %s22, %s23
    %p37 = scmp.eq.s32.totalorder %s15, 1
    %p38 = por %p36, %p37
    %p40 = scmp.ne.s32.totalorder %s23, %s39
    %p41 = scmp.eq.s32.totalorder %s15, 0
    %p42 = por %p40, %p41
    %s44 = sadd.s32 %s43, 1
    %p47 = scmp.eq.s32.totalorder %s9, 1
    %p48 = scmp.ne.s32.totalorder %s43, %s45
    %p49 = scmp.eq.s32.totalorder %s9, 0
    %p50 = por %p48, %p49
    %p51 = scmp.ne.s32.totalorder %s43, %s45
    %p52 = scmp.eq.s32.totalorder %s14, 1
    %p53 = por %p51, %p52
    %p54 = scmp.ne.s32.totalorder %s45, %s46
    %p55 = scmp.eq.s32.totalorder %s14, 0
    %p56 = por %p54, %p55
    %p57 = scmp.ne.s32.totalorder %s45, %s46
    %p58 = scmp.eq.s32.totalorder %s15, 1
    %p59 = por %p57, %p58
    %p61 = scmp.ne.s32.totalorder %s46, %s60
    %p62 = scmp.eq.s32.totalorder %s15, 0
    %p63 = por %p61, %p62
    %s65 = sadd.s32 %s64, 1
    %p68 = scmp.eq.s32.totalorder %s9, 1
    %p69 = scmp.ne.s32.totalorder %s64, %s66
    %p70 = scmp.eq.s32.totalorder %s9, 0
    %p71 = por %p69, %p70
    %p72 = scmp.ne.s32.totalorder %s64, %s66
    %p73 = scmp.eq.s32.totalorder %s14, 1
    %p74 = por %p72, %p73
    %p75 = scmp.ne.s32.totalorder %s66, %s67
    %p76 = scmp.eq.s32.totalorder %s14, 0
    %p77 = por %p75, %p76
    %p78 = scmp.ne.s32.totalorder %s66, %s67
    %p79 = scmp.eq.s32.totalorder %s15, 1
    %p80 = por %p78, %p79
    %p82 = scmp.ne.s32.totalorder %s67, %s81
    %p83 = scmp.eq.s32.totalorder %s15, 0
    %p84 = por %p82, %p83
    %s85 = ssub.s32 %s9, %s16
    %p86 = scmp.eq.s32.totalorder %s85, 0
    %s88 = sadd.s32 %s87, 1
    %s89 = scalar_select %p86, %s87, %s88
    %p92 = pneg %p86
    %p93 = scmp.eq.s32.totalorder %s9, 1
    %p94 = por %p92, %p93
    %p95 = scmp.ne.s32.totalorder %s87, %s90
    %p96 = scmp.eq.s32.totalorder %s9, 0
    %p97 = por %p95, %p96
    %p98 = scmp.ne.s32.totalorder %s87, %s90
    %p99 = scmp.eq.s32.totalorder %s14, 1
    %p100 = por %p98, %p99
    %p101 = scmp.ne.s32.totalorder %s90, %s91
    %p102 = scmp.eq.s32.totalorder %s14, 0
    %p103 = por %p101, %p102
    %p104 = scmp.ne.s32.totalorder %s90, %s91
    %p105 = scmp.eq.s32.totalorder %s15, 1
    %p106 = por %p104, %p105
    %p108 = scmp.ne.s32.totalorder %s91, %s107
    %p109 = scmp.eq.s32.totalorder %s15, 0
    %p110 = por %p108, %p109
    %p111 = scmp.le.s32.totalorder 1, %s9
    %p112 = scmp.lt.s32.totalorder %s9, 3
    %p113 = pnand %p111, %p112
    %p114 = pneg %p113
    // Predicated region
    $region9: #{base_paper_net_forward.1} parent=5 // pred_check
      _
    $region10: #{base_paper_net_forward.1} parent=5 // pred_check_branch
      %116 = sbr.rel (%p113) target = $region12
    $region11: #{base_paper_net_forward.1} parent=5 // pred_region
      %s117 = ssub.s32 %s9, 1
      // Predicated region
      $region13: #{base_paper_net_forward.1} parent=11 // pred_check
        %p118 = pneg %p56
      $region14: #{base_paper_net_forward.1} parent=11 // pred_check_branch
        %120 = sbr.rel (%p118) target = $region16
      $region15: #{base_paper_net_forward.1} parent=11 // pred_region
        _
      $region16: #{base_paper_net_forward.1} parent=11 // pred_fallthru
        _
      // Predicated region
      $region17: #{base_paper_net_forward.1} parent=11 // pred_check
        %p121 = pneg %p77
      $region18: #{base_paper_net_forward.1} parent=11 // pred_check_branch
        %123 = sbr.rel (%p121) target = $region20
      $region19: #{base_paper_net_forward.1} parent=11 // pred_region
        _
      $region20: #{base_paper_net_forward.1} parent=11 // pred_fallthru
        _
    $region12: #{base_paper_net_forward.1} parent=5 // pred_fallthru
      _
    %p124 = scmp.lt.s32.totalorder %s9, 2
    // Predicated region
    $region21: #{base_paper_net_forward.1} parent=5 // pred_check
      %p125 = pneg %p124
    $region22: #{base_paper_net_forward.1} parent=5 // pred_check_branch
      %127 = sbr.rel (%p125) target = $region24
    $region23: #{base_paper_net_forward.1} parent=5 // pred_region
      // Predicated region
      $region25: #{base_paper_net_forward.1} parent=23 // pred_check
        %p128 = pneg %p29
      $region26: #{base_paper_net_forward.1} parent=23 // pred_check_branch
        %130 = sbr.rel (%p128) target = $region28
      $region27: #{base_paper_net_forward.1} parent=23 // pred_region
        %p131 = scmp.lt.s32.totalorder %s9, 1
        %s132 = scalar_select %p131, %s9, 1
        %s133 = smul.addr %s132, 240
        %s134 = smul.addr %s133, 4
        %s135 = scalar_lea.vmem %s0, %s134
      $region28: #{base_paper_net_forward.1} parent=23 // pred_fallthru
        _
    $region24: #{base_paper_net_forward.1} parent=5 // pred_fallthru
      _
    %p136 = scmp.le.s32.totalorder 1, %s9
    %p137 = scmp.lt.s32.totalorder %s9, 3
    %p138 = pnand %p136, %p137
    %p139 = pneg %p138
    // Predicated region
    $region29: #{base_paper_net_forward.1} parent=5 // pred_check
      _
    $region30: #{base_paper_net_forward.1} parent=5 // pred_check_branch
      %141 = sbr.rel (%p138) target = $region32
    $region31: #{base_paper_net_forward.1} parent=5 // pred_region
      %s142 = ssub.s32 %s9, 1
      %p143 = scmp.lt.s32.totalorder %s14, 1
      %s144 = scalar_select %p143, %s14, 1
      %s145 = smul.addr %s144, 240
      %s146 = smul.addr %s145, 4
      %s147 = scalar_lea.vmem %s0, %s146
      %p148 = pneg %p35
      %p149 = pneg %p32
      %p150 = pneg %p56
      %p151 = pneg %p53
      %p152 = pneg %p77
      %p153 = pneg %p74
      %p154 = pneg %p103
      %p155 = pneg %p100
      %p156 = scmp.lt.s32.totalorder %s14, 1
      %s157 = scalar_select %p156, %s14, 1
      %s158 = smul.addr %s157, 8
      %s159 = scalar_lea.vmem %s3, %s158
      %p160 = scmp.lt.s32.totalorder %s14, 1
      %s161 = scalar_select %p160, %s14, 1
      %s162 = smul.addr %s161, 240
      %s163 = smul.addr %s162, 4
      %s164 = scalar_lea.vmem %s0, %s163
      %p165 = scmp.lt.s32.totalorder %s14, 1
      %s166 = scalar_select %p165, %s14, 1
      %s167 = smul.addr %s166, 8
      %s168 = scalar_lea.vmem %s3, %s167
      %v170 = vld [vmem:[%s1] sm:$0xf]
      %v171 = vld [vmem:[%s1 + $0x4] sm:$0xf]
      %v172 = vld [vmem:[%s1 + $0x8] sm:$0xf]
      %v173 = vld [vmem:[%s1 + $0xc] sm:$0xf]
      %v174 = vlaneseq
      %v175 = vand.u32 %v174, 127
      loop: start=0, step=1, limit=12
      $region33: #{base_paper_net_forward.1} parent=31 // loop_pre_header
        _
      $region34: #{base_paper_net_forward.1} parent=31 // loop_header
        %s177 = sphi 0, %s181
        %p178 = scmp.ge.s32.totalorder %s177, 12
        %v182 = vphi 0.0, %v390
        %v183 = vphi 0.0, %v391
        %v184 = vphi 0.0, %v392
        %v185 = vphi 0.0, %v393
        %v186 = vphi 0.0, %v409
        %v187 = vphi 0.0, %v410
        %v188 = vphi 0.0, %v411
        %v189 = vphi 0.0, %v412
      $region35: #{base_paper_net_forward.1} parent=31 // loop_header_branch
        %180 = sbr.rel (%p178) target = $region39
      $region36: #{base_paper_net_forward.1} parent=31 // loop_body
        %s190 = smul.u32 %s177, 20
        %s191 = smul.addr %s190, 4
        %s192 = scalar_lea.vmem %s164, %s191
        %v193 = vld [vmem:[%s192] sm:$0xff]
        %v194 = vld [vmem:[%s192 + $0x8] sm:$0xff]
        %v195 = vld [vmem:[%s192 + $0x10] sm:$0xff]
        %v196 = vld [vmem:[%s192 + $0x18] sm:$0xff]
        %v197 = vld [vmem:[%s192 + $0x20] sm:$0xff]
        %v198 = vld [vmem:[%s192 + $0x28] sm:$0xff]
        %v199 = vld [vmem:[%s192 + $0x30] sm:$0xff]
        %v200 = vld [vmem:[%s192 + $0x38] sm:$0xff]
        %v201 = vld [vmem:[%s192 + $0x40] sm:$0x33]
        %v202 = vld [vmem:[%s192 + $0x48] sm:$0x33]
        %v207 = vunpack.c.l.b16 %v170
        %v208 = vunpack.c.l.b16 %v171
        %v209 = vunpack.c.l.b16 %v172
        %v210 = vunpack.c.l.b16 %v173
        %v211 = vpack.c.b16 %v208, %v207
        %v212 = vpack.c.b16 %v210, %v209
        %v223 = vunpack.c.l.b16 %v193
        %v224 = vunpack.c.h.b16 %v193
        %v225 = vunpack.c.l.b16 %v194
        %v226 = vunpack.c.h.b16 %v194
        %v227 = vunpack.c.l.b16 %v195
        %v228 = vunpack.c.h.b16 %v195
        %v229 = vunpack.c.l.b16 %v196
        %v230 = vunpack.c.h.b16 %v196
        %v231 = vunpack.c.l.b16 %v197
        %v232 = vunpack.c.h.b16 %v197
        %v233 = vunpack.c.l.b16 %v198
        %v234 = vunpack.c.h.b16 %v198
        %v235 = vunpack.c.l.b16 %v199
        %v236 = vunpack.c.h.b16 %v199
        %v237 = vunpack.c.l.b16 %v200
        %v238 = vunpack.c.h.b16 %v200
        %v239 = vunpack.c.l.b16 %v201
        %v240 = vunpack.c.h.b16 %v201
        %v241 = vunpack.c.l.b16 %v202
        %v242 = vunpack.c.h.b16 %v202
        %v243 = vpack.c.b16 %v227, %v223
        %v244 = vpack.c.b16 %v228, %v224
        %v245 = vpack.c.b16 %v229, %v225
        %v246 = vpack.c.b16 %v230, %v226
        %v247 = vpack.c.b16 %v235, %v231
        %v248 = vpack.c.b16 %v236, %v232
        %v249 = vpack.c.b16 %v237, %v233
        %v250 = vpack.c.b16 %v238, %v234
        %v251 = vpack.c.b16 %v239, %v239
        %v252 = vpack.c.b16 %v240, %v240
        %v253 = vpack.c.b16 %v241, %v241
        %v254 = vpack.c.b16 %v242, %v242
        %vm263 = vcmask 293888
        %v265 = vsel %vm263, %v211, 0
        %v268 = vsel %vm263, %v212, 0
        %vm270 = vcmask 1041408
        %v272 = vsel %vm270, %v251, 0
        %v275 = vsel %vm270, %v252, 0
        %v278 = vsel %vm270, %v253, 0
        %v281 = vsel %vm270, %v254, 0
        %283 = vmatpush.bf16.msra.mxu0 0
        %284 = vmatpush.bf16.msra.mxu0 0
        %285 = vmatpush.bf16.msra.mxu0 0
        %286 = vmatpush.bf16.msra.mxu0 0
        %287 = vmatpush.bf16.msra.mxu0 0
        %288 = vmatpush.bf16.msra.mxu0 %v272
        %289 = vmatpush.bf16.msra.mxu0 %v247
        %290 = vmatpush.bf16.msra.mxu0 %v243
        %291 = vmatmul.bf16.gmra.mxu0 %v265
        %v292 = vpop.f32.mrf.mxu0
        %v293 = vadd.f32 0.0, %v292
        %v294 = vpop.f32.mrf.mxu0
        %v295 = vadd.f32 0.0, %v294
        %296 = vmatmul.bf16.gmra.mxu0 %v268
        %v297 = vpop.f32.mrf.mxu0
        %v298 = vadd.f32 0.0, %v297
        %v299 = vpop.f32.mrf.mxu0
        %v300 = vadd.f32 0.0, %v299
        %301 = vdwg.mxu0
        %302 = vmatpush.bf16.msra.mxu0 0
        %303 = vmatpush.bf16.msra.mxu0 0
        %304 = vmatpush.bf16.msra.mxu0 0
        %305 = vmatpush.bf16.msra.mxu0 0
        %306 = vmatpush.bf16.msra.mxu0 0
        %307 = vmatpush.bf16.msra.mxu0 %v275
        %308 = vmatpush.bf16.msra.mxu0 %v248
        %309 = vmatpush.bf16.msra.mxu0 %v244
        %310 = vmatmul.bf16.gmra.mxu0 %v265
        %v311 = vpop.f32.mrf.mxu0
        %v312 = vadd.f32 0.0, %v311
        %v313 = vpop.f32.mrf.mxu0
        %v314 = vadd.f32 0.0, %v313
        %315 = vmatmul.bf16.gmra.mxu0 %v268
        %v316 = vpop.f32.mrf.mxu0
        %v317 = vadd.f32 0.0, %v316
        %v318 = vpop.f32.mrf.mxu0
        %v319 = vadd.f32 0.0, %v318
        %320 = vdwg.mxu0
        %321 = vmatpush.bf16.msra.mxu0 0
        %322 = vmatpush.bf16.msra.mxu0 0
        %323 = vmatpush.bf16.msra.mxu0 0
        %324 = vmatpush.bf16.msra.mxu0 0
        %325 = vmatpush.bf16.msra.mxu0 0
        %326 = vmatpush.bf16.msra.mxu0 %v278
        %327 = vmatpush.bf16.msra.mxu0 %v249
        %328 = vmatpush.bf16.msra.mxu0 %v245
        %329 = vmatmul.bf16.gmra.mxu0 %v265
        %v330 = vpop.f32.mrf.mxu0
        %v331 = vadd.f32 0.0, %v330
        %v332 = vpop.f32.mrf.mxu0
        %v333 = vadd.f32 0.0, %v332
        %334 = vmatmul.bf16.gmra.mxu0 %v268
        %v335 = vpop.f32.mrf.mxu0
        %v336 = vadd.f32 0.0, %v335
        %v337 = vpop.f32.mrf.mxu0
        %v338 = vadd.f32 0.0, %v337
        %339 = vdwg.mxu0
        %340 = vmatpush.bf16.msra.mxu0 0
        %341 = vmatpush.bf16.msra.mxu0 0
        %342 = vmatpush.bf16.msra.mxu0 0
        %343 = vmatpush.bf16.msra.mxu0 0
        %344 = vmatpush.bf16.msra.mxu0 0
        %345 = vmatpush.bf16.msra.mxu0 %v281
        %346 = vmatpush.bf16.msra.mxu0 %v250
        %347 = vmatpush.bf16.msra.mxu0 %v246
        %348 = vmatmul.bf16.gmra.mxu0 %v265
        %v349 = vpop.f32.mrf.mxu0
        %v350 = vadd.f32 0.0, %v349
        %v351 = vpop.f32.mrf.mxu0
        %v352 = vadd.f32 0.0, %v351
        %353 = vmatmul.bf16.gmra.mxu0 %v268
        %v354 = vpop.f32.mrf.mxu0
        %v355 = vadd.f32 0.0, %v354
        %v356 = vpop.f32.mrf.mxu0
        %v357 = vadd.f32 0.0, %v356
        %358 = vdwg.mxu0
        %v359 = vmax.f32 %v293, %v312
        %v360 = vmax.f32 %v295, %v314
        %v361 = vmax.f32 %v298, %v317
        %v362 = vmax.f32 %v300, %v319
        %v363 = vmax.f32 %v331, %v350
        %v364 = vmax.f32 %v333, %v352
        %v365 = vmax.f32 %v336, %v355
        %v366 = vmax.f32 %v338, %v357
        %v367 = vmax.f32 %v359, %v363
        %v368 = vmax.f32 %v360, %v364
        %v369 = vmax.f32 %v361, %v365
        %v370 = vmax.f32 %v362, %v366
        %v371 = vmax.f32 %v367, 0.0
        %v372 = vmax.f32 %v368, 0.0
        %v373 = vmax.f32 %v369, 0.0
        %v374 = vmax.f32 %v370, 0.0
        %s375 = smul.u32 %s177, 4
        %s376 = smul.addr %s375, 4
        %s377 = scalar_lea.vmem %s2, %s376
        %v378 = vld [vmem:[%s377] sm:$0xf]
        %v379 = vld [vmem:[%s377 + $0x4] sm:$0xf]
        %v380 = vld [vmem:[%s377 + $0x8] sm:$0xf]
        %v381 = vld [vmem:[%s377 + $0xc] sm:$0xf]
        %v382 = vunpack.c.l.bf16 %v378
        %v383 = vunpack.c.l.bf16 %v379
        %v384 = vunpack.c.l.bf16 %v380
        %v385 = vunpack.c.l.bf16 %v381
        %v386 = vmul.f32 %v371, %v382
        %v387 = vmul.f32 %v372, %v383
        %v388 = vmul.f32 %v373, %v384
        %v389 = vmul.f32 %v374, %v385
        %v390 = vadd.f32 %v182, %v386
        %v391 = vadd.f32 %v183, %v387
        %v392 = vadd.f32 %v184, %v388
        %v393 = vadd.f32 %v185, %v389
        %s394 = sadd.s32 %s375, 48
        %s395 = smul.addr %s394, 4
        %s396 = scalar_lea.vmem %s2, %s395
        %v397 = vld [vmem:[%s396] sm:$0xf]
        %v398 = vld [vmem:[%s396 + $0x4] sm:$0xf]
        %v399 = vld [vmem:[%s396 + $0x8] sm:$0xf]
        %v400 = vld [vmem:[%s396 + $0xc] sm:$0xf]
        %v401 = vunpack.c.l.bf16 %v397
        %v402 = vunpack.c.l.bf16 %v398
        %v403 = vunpack.c.l.bf16 %v399
        %v404 = vunpack.c.l.bf16 %v400
        %v405 = vmul.f32 %v371, %v401
        %v406 = vmul.f32 %v372, %v402
        %v407 = vmul.f32 %v373, %v403
        %v408 = vmul.f32 %v374, %v404
        %v409 = vadd.f32 %v186, %v405
        %v410 = vadd.f32 %v187, %v406
        %v411 = vadd.f32 %v188, %v407
        %v412 = vadd.f32 %v189, %v408
      $region37: #{base_paper_net_forward.1} parent=31 // loop_footer
        %s181 = sadd.s32 1, %s177
      $region38: #{base_paper_net_forward.1} parent=31 // loop_footer_branch
        %176 = sbr.rel target = $region34
      $region39: #{base_paper_net_forward.1} parent=31 // loop_exit
        _
      %vm413 = vcmp.eq.s32.totalorder %v175, 0
      %v414 = vadd.f32 %v182, %v183
      %v415 = vadd.f32 %v414, %v184
      %v416 = vadd.f32 %v415, %v185
      %417 = vadd.xlane.f32.xlu0 %v416
      %v418 = vpop.xlane.xlu0 %417
      %v419 = vrot.slane %v418, 4
      %v420 = vadd.f32 %v418, %v419
      %v421 = vrot.slane %v420, 2
      %v422 = vadd.f32 %v420, %v421
      %v423 = vrot.slane %v422, 1
      %v424 = vadd.f32 %v422, %v423
      %s425 = vtos %v424
      %vm426 = vcmp.eq.s32.totalorder %v175, 1
      %v427 = vadd.f32 %v186, %v187
      %v428 = vadd.f32 %v427, %v188
      %v429 = vadd.f32 %v428, %v189
      %430 = vadd.xlane.f32.xlu0 %v429
      %v431 = vpop.xlane.xlu0 %430
      %v432 = vrot.slane %v431, 4
      %v433 = vadd.f32 %v431, %v432
      %v434 = vrot.slane %v433, 2
      %v435 = vadd.f32 %v433, %v434
      %v436 = vrot.slane %v435, 1
      %v437 = vadd.f32 %v435, %v436
      %s438 = vtos %v437
      %v439 = vstv %s438
      %v440 = vsel %vm426, %v439, 0.0
      %v441 = vstv %s425
      %v442 = vsel %vm413, %v441, %v440
      %443 = vst [vmem:[%s168] sm:$0xff] %v442
      %p444 = scmp.lt.s32.totalorder %s14, 1
      %s445 = scalar_select %p444, %s14, 1
      %s446 = smul.addr %s445, 8
      %s447 = scalar_lea.vmem %s3, %s446
      // Predicated region
      $region40: #{base_paper_net_forward.1} parent=31 // pred_check
        %p448 = pneg %p100
      $region41: #{base_paper_net_forward.1} parent=31 // pred_check_branch
        %450 = sbr.rel (%p448) target = $region43
      $region42: #{base_paper_net_forward.1} parent=31 // pred_region
        _
      $region43: #{base_paper_net_forward.1} parent=31 // pred_fallthru
        _
    $region32: #{base_paper_net_forward.1} parent=5 // pred_fallthru
      _
    %p451 = scmp.le.s32.totalorder 2, %s9
    // Predicated region
    $region44: #{base_paper_net_forward.1} parent=5 // pred_check
      %p452 = pneg %p451
    $region45: #{base_paper_net_forward.1} parent=5 // pred_check_branch
      %454 = sbr.rel (%p452) target = $region47
    $region46: #{base_paper_net_forward.1} parent=5 // pred_region
      %s455 = ssub.s32 %s9, 2
      // Predicated region
      $region48: #{base_paper_net_forward.1} parent=46 // pred_check
        %p456 = pneg %p106
      $region49: #{base_paper_net_forward.1} parent=46 // pred_check_branch
        %458 = sbr.rel (%p456) target = $region51
      $region50: #{base_paper_net_forward.1} parent=46 // pred_region
        %p459 = scmp.lt.s32.totalorder %s15, 1
        %s460 = scalar_select %p459, %s15, 1
        %s461 = smul.addr %s460, 8
        %s462 = scalar_lea.vmem %s3, %s461
      $region51: #{base_paper_net_forward.1} parent=46 // pred_fallthru
        _
    $region47: #{base_paper_net_forward.1} parent=5 // pred_fallthru
      _
  $region6: #{base_paper_net_forward.1} parent=0 // loop_footer
    %s13 = sadd.s32 1, %s9
  $region7: #{base_paper_net_forward.1} parent=0 // loop_footer_branch
    %8 = sbr.rel target = $region3
  $region8: #{base_paper_net_forward.1} parent=0 // loop_exit
    _

</llo_original>
